<compile_context>
chip_gen: v5e
topology: v5e:2x2
jax: 0.10.0
libtpu: 0.0.40
codegen_flags: <defaults>
</compile_context>

<pallas_src>
import math
import numpy as np

import jax
import jax.numpy as jnp
from jax.experimental import pallas as pl
from jax.experimental.pallas import tpu as pltpu

NUM_KEYPOINTS = 10
NUM_LABELS = 2 * NUM_KEYPOINTS + 3   # 23
NUM_COORD = NUM_LABELS - 1           # 22
LANE = 128
MAX_TILE_ROWS = 128                  # 128 rows x 128 lanes = 16384 lanes / tile


def _round_up(x, m):
    return -(-x // m) * m


# --------------------------------------------------------------------------
# Pallas kernels
# --------------------------------------------------------------------------

def _act_kernel(c_ref, o_ref):
    """Pred-box activation for the 4 rows [x, y, w, h] (raw logits).

    rows 0,1 -> sigmoid ; rows 2,3 -> exp.  One exp per element.
    Block shape: (4, TR, 128).
    """
    c = c_ref[...]
    row = jax.lax.broadcasted_iota(jnp.int32, c.shape, 0)
    is_xy = row < 2
    e = jnp.exp(jnp.where(is_xy, -c, c))
    o_ref[...] = jnp.where(is_xy, 1.0 / (1.0 + e), e)


def _conf_kernel(conf_ref, tgt_ref, out_ref):
    """Dense objectness BCE, accumulated over the tiled (row, lane) grid.

    conf_ref : (TR, 128)    raw objectness logits
    tgt_ref  : (2, TR, 128) packed [tconf ; conf_mask]   (host built, pad = 0)
    out_ref  : (1, 8, 128)  per-core lane/sublane-wise partial-sum block
    """
    @pl.when(pl.program_id(1) == 0)
    def _init():
        out_ref[...] = jnp.zeros_like(out_ref)

    x = conf_ref[...]
    tconf = tgt_ref[0]
    cm = tgt_ref[1]

    p = 1.0 / (1.0 + jnp.exp(-x))
    pm = p * cm
    tm = tconf * cm
    # PyTorch BCELoss clamps log terms at -100; pad / masked cells give 0.
    logp = jnp.maximum(jnp.log(pm), -100.0)
    log1mp = jnp.maximum(jnp.log(1.0 - pm), -100.0)
    bce = -(tm * logp + (1.0 - tm) * log1mp)

    # Deferred reduction: fold the tile onto an (8, 128) block with pure VPU
    # adds (no per-tile XLU funnel); final scalar reduce happens in XLA.
    partial = jnp.sum(bce.reshape(-1, 8, LANE), axis=0)
    out_ref[...] += partial[None, :, :]


def _obj_kernel(coord_ref, cls_ref, tcoord_ref, tcls_ref, valid_ref, out_ref):
    """Obj-cell losses on the <= 50*nB gathered GT cells (single block).

    coord_ref  : (22, M) raw coord logits at obj cells
    cls_ref    : (nC, M) raw class logits at obj cells
    tcoord_ref : (22, M) targets       tcls_ref : (nC, M) one-hot targets
    valid_ref  : (1, M)  1 for real obj cells, 0 for padding
    out_ref    : (1, 128) packed sums [xy_bce, wh_mse, corner_mse, cls_bce]
    """
    c = coord_ref[...]
    t = tcoord_ref[...]
    v = valid_ref[...]

    # xy BCE on sigmoid(coord[0:2]) with the PyTorch BCELoss -100 clamp.
    p = 1.0 / (1.0 + jnp.exp(-c[0:2, :]))
    logp = jnp.maximum(jnp.log(p), -100.0)
    log1mp = jnp.maximum(jnp.log(1.0 - p), -100.0)
    bce_xy = -(t[0:2, :] * logp + (1.0 - t[0:2, :]) * log1mp)
    xy_sum = jnp.sum(bce_xy * v, keepdims=True)

    # Squared error on raw logits, static row slices (no iota masking).
    d = c - t
    se = d * d * v
    wh_sum = jnp.sum(se[2 * NUM_KEYPOINTS:, :], keepdims=True)
    corner_sum = jnp.sum(se[2:2 * NUM_KEYPOINTS, :], keepdims=True)

    # Class BCE-with-logits (PyTorch stable form, no clamp).
    z = cls_ref[...]
    tc = tcls_ref[...]
    cls_e = jnp.maximum(z, 0.0) - z * tc + jnp.log(1.0 + jnp.exp(-jnp.abs(z)))
    cls_sum = jnp.sum(cls_e * v, keepdims=True)

    lane = jax.lax.broadcasted_iota(jnp.int32, out_ref.shape, 1)
    out_ref[...] = (jnp.where(lane == 0, xy_sum, 0.0)
                    + jnp.where(lane == 1, wh_sum, 0.0)
                    + jnp.where(lane == 2, corner_sum, 0.0)
                    + jnp.where(lane == 3, cls_sum, 0.0))


# --------------------------------------------------------------------------
# Pallas wrappers
# --------------------------------------------------------------------------

def act_pallas(coord4, tr, tiles_per_core):
    """coord4: (4, R_pad, 128) raw [x, y, w, h] logits -> activated, same shape."""
    r_pad = coord4.shape[1]
    spec = pl.BlockSpec((4, tr, LANE),
                        lambda c, i: (0, c * tiles_per_core + i, 0))
    return pl.pallas_call(
        _act_kernel,
        grid=(2, tiles_per_core),
        in_specs=[spec],
        out_specs=spec,
        out_shape=jax.ShapeDtypeStruct((4, r_pad, LANE), jnp.float32),
        compiler_params=pltpu.CompilerParams(
            dimension_semantics=("parallel", "parallel")),
    )(coord4)


def conf_loss_pallas(conf_dev, tgt, tr, tiles_per_core):
    """conf_dev: (R_pad, 128) logits, tgt: (2, R_pad, 128) [tconf; conf_mask].

    Returns (2, 8, 128) per-core partial sums; caller does jnp.sum(...).
    """
    return pl.pallas_call(
        _conf_kernel,
        grid=(2, tiles_per_core),
        in_specs=[
            pl.BlockSpec((tr, LANE),
                         lambda c, i: (c * tiles_per_core + i, 0)),
            pl.BlockSpec((2, tr, LANE),
                         lambda c, i: (0, c * tiles_per_core + i, 0)),
        ],
        out_specs=pl.BlockSpec((1, 8, LANE), lambda c, i: (c, 0, 0)),
        out_shape=jax.ShapeDtypeStruct((2, 8, LANE), jnp.float32),
        compiler_params=pltpu.CompilerParams(
            dimension_semantics=("parallel", "arbitrary")),
    )(conf_dev, tgt)


def obj_loss_pallas(coord_obj, cls_obj, tcoord_obj, tcls_obj, valid):
    """Single-block kernel over the gathered obj cells. Returns (1, 128)."""
    return pl.pallas_call(
        _obj_kernel,
        out_shape=jax.ShapeDtypeStruct((1, LANE), jnp.float32),
    )(coord_obj, cls_obj, tcoord_obj, tcls_obj, valid)


# --------------------------------------------------------------------------
# Host-side (numpy) target assignment — identical semantics to PyTorch version
# --------------------------------------------------------------------------
# TODO(synk): build_targets is sequential, data-dependent per-GT assignment
# (argmax over ragged GT list, scalar scatter writes) — no clean Pallas
# equivalent; it runs on the host exactly as the PyTorch module runs it on CPU.

def multi_bbox_ious_np(boxes1, boxes2):
    # boxes: (4, N) as (cx, cy, w, h)
    w1, h1 = boxes1[2], boxes1[3]
    w2, h2 = boxes2[2], boxes2[3]
    mx = np.minimum(boxes1[0] - w1 / 2.0, boxes2[0] - w2 / 2.0)
    Mx = np.maximum(boxes1[0] + w1 / 2.0, boxes2[0] + w2 / 2.0)
    my = np.minimum(boxes1[1] - h1 / 2.0, boxes2[1] - h2 / 2.0)
    My = np.maximum(boxes1[1] + h1 / 2.0, boxes2[1] + h2 / 2.0)
    uw = Mx - mx
    uh = My - my
    cw = w1 + w2 - uw
    ch = h1 + h2 - uh
    mask = (cw <= 0) | (ch <= 0)
    area1 = w1 * h1
    area2 = w2 * h2
    carea = np.where(mask, 0.0, cw * ch)
    uarea = area1 + area2 - carea
    return carea / uarea


def bbox_iou_np(box1, box2):
    w1, h1 = box1[2], box1[3]
    w2, h2 = box2[2], box2[3]
    mx = min(box1[0] - w1 / 2.0, box2[0] - w2 / 2.0)
    Mx = max(box1[0] + w1 / 2.0, box2[0] + w2 / 2.0)
    my = min(box1[1] - h1 / 2.0, box2[1] - h2 / 2.0)
    My = max(box1[1] + h1 / 2.0, box2[1] + h2 / 2.0)
    uw = Mx - mx
    uh = My - my
    cw = w1 + w2 - uw
    ch = h1 + h2 - uh
    if cw <= 0 or ch <= 0:
        return 0.0
    carea = cw * ch
    uarea = w1 * h1 + w2 * h2 - carea
    return float(carea / uarea)


def build_targets_np(pred_boxes4, target, anchors, nA, nH, nW, nC,
                     net_w, net_h, ignore_thresh, rescore):
    """pred_boxes4: (D, 4) = pred [x, y, w, h] per (b, a, h, w) location."""
    nB = target.shape[0]
    anchor_step = anchors.shape[1]
    noobj_mask = np.ones((nB, nA, nH, nW), np.float32)
    obj_mask = np.zeros((nB, nA, nH, nW), np.float32)
    coord_mask = np.zeros((nB, nA, nH, nW), np.float32)
    tcoord = np.zeros((NUM_COORD, nB, nA, nH, nW), np.float32)
    tconf = np.zeros((nB, nA, nH, nW), np.float32)
    tcls = np.zeros((nB, nA, nH, nW, nC), np.float32)
    nAnchors = nA * nH * nW
    nPixels = nH * nW
    nGT = nRecall = nRecall75 = 0
    for b in range(nB):
        cur_pred = pred_boxes4[b * nAnchors:(b + 1) * nAnchors].T       # (4, nAnchors)
        cur_ious = np.zeros(nAnchors, np.float32)
        tbox = target[b].reshape(-1, NUM_LABELS)
        for t in range(50):
            if tbox[t][1] == 0:
                break
            gx, gy = tbox[t][1] * nW, tbox[t][2] * nH
            gw, gh = tbox[t][21] * net_w, tbox[t][22] * net_h
            cur_gt = np.tile(np.array([gx, gy, gw, gh], np.float32).reshape(4, 1),
                             (1, nAnchors))
            cur_ious = np.maximum(cur_ious, multi_bbox_ious_np(cur_pred, cur_gt))
        ignore_ix = (cur_ious > ignore_thresh).reshape(nA, nH, nW)
        noobj_mask[b][ignore_ix] = 0
        for t in range(50):
            if tbox[t][1] == 0:
                break
            nGT += 1
            gx, gy = tbox[t][1] * nW, tbox[t][2] * nH
            gw, gh = float(tbox[t][21] * net_w), float(tbox[t][22] * net_h)
            gi, gj = int(gx), int(gy)
            tmp_gt = np.tile(np.array([0, 0, gw, gh], np.float32).reshape(4, 1), (1, nA))
            anchor_boxes = np.concatenate(
                [np.zeros((nA, anchor_step), np.float32), anchors], axis=1).T
            best_n = int(np.argmax(multi_bbox_ious_np(anchor_boxes, tmp_gt)))
            gt_box = np.array([gx, gy, gw, gh], np.float32)
            pred_box = pred_boxes4[b * nAnchors + best_n * nPixels + gj * nW + gi]
            iou = bbox_iou_np(gt_box, pred_box)
            obj_mask[b, best_n, gj, gi] = 1
            noobj_mask[b, best_n, gj, gi] = 0
            coord_mask[b, best_n, gj, gi] = 2.0 - tbox[t][21] * tbox[t][22]
            for i in range(NUM_KEYPOINTS):
                tcoord[2 * i, b, best_n, gj, gi] = tbox[t][2 * i + 1] * nW - gi
                tcoord[2 * i + 1, b, best_n, gj, gi] = tbox[t][2 * i + 2] * nH - gj
            tcoord[2 * NUM_KEYPOINTS, b, best_n, gj, gi] = math.log(gw / anchors[best_n][0])
            tcoord[2 * NUM_KEYPOINTS + 1, b, best_n, gj, gi] = math.log(gh / anchors[best_n][1])
            tcls[b, best_n, gj, gi, int(tbox[t][0])] = 1
            tconf[b, best_n, gj, gi] = iou if rescore else 1.0
            if iou > 0.5:
                nRecall += 1
                if iou > 0.75:
                    nRecall75 += 1
    return (nGT, nRecall, nRecall75, obj_mask, noobj_mask, coord_mask,
            tcoord, tconf, tcls)


# --------------------------------------------------------------------------
# YoloLayer (Pallas)
# --------------------------------------------------------------------------

class YoloLayerPallas:
    def __init__(self, anchor_mask=(), num_classes=0, anchors=(1.0,),
                 num_anchors=1):
        self.anchor_mask = list(anchor_mask)
        self.num_classes = num_classes
        self.anchors = list(anchors)
        self.num_anchors = num_anchors
        self.anchor_step = len(anchors) // num_anchors
        self.rescore = 1
        self.ignore_thresh = 0.5
        self.truth_thresh = 1.0
        self.nth_layer = 0
        self.seen = 0
        self.net_width = 0
        self.net_height = 0

    def _tiling(self, D):
        # fused D axis laid out as (R_pad, 128); row tiles split over 2 cores
        r = _round_up(D, LANE) // LANE
        tr = min(MAX_TILE_ROWS, _round_up(max(-(-r // 2), 1), 8))
        r_pad = _round_up(r, 2 * tr)
        tiles_per_core = r_pad // (2 * tr)
        return tr, r_pad, tiles_per_core

    def forward(self, output, target):
        nB, _, nH, nW = output.shape
        nA = len(self.anchor_mask)
        nC = self.num_classes

        masked = []
        for m in self.anchor_mask:
            masked += self.anchors[m * self.anchor_step:(m + 1) * self.anchor_step]
        anchors = np.asarray(masked, np.float32).reshape(nA, self.anchor_step)

        D = nB * nA * nH * nW
        tr, r_pad, tiles_per_core = self._tiling(D)
        D_pad = r_pad * LANE
        pad = D_pad - D

        out5 = output.reshape(nB, nA, NUM_LABELS + nC, nH, nW)

        # ---- Pallas kernel 1: pred-box activation (4 rows only) ----
        ch4 = jnp.asarray([0, 1, 2 * NUM_KEYPOINTS, 2 * NUM_KEYPOINTS + 1])
        coord4 = jnp.transpose(out5[:, :, ch4], (2, 0, 1, 3, 4)).reshape(4, D)
        coord4 = jnp.pad(coord4, ((0, 0), (0, pad))).reshape(4, r_pad, LANE)
        act4 = act_pallas(coord4, tr, tiles_per_core)
        act4_host = np.asarray(jax.device_get(act4)).reshape(4, D_pad)[:, :D]

        # fold grid offsets / anchor scaling on the host (feeds build_targets only)
        nHW = nH * nW
        grid_x = np.tile(np.arange(nW, dtype=np.float32), nB * nA * nH)
        grid_y = np.tile(np.repeat(np.arange(nH, dtype=np.float32), nW), nB * nA)
        anchor_w = np.tile(np.repeat(anchors[:, 0], nHW), nB)
        anchor_h = np.tile(np.repeat(anchors[:, 1], nHW), nB)

        pred4 = np.empty((D, 4), np.float32)
        pred4[:, 0] = act4_host[0] + grid_x
        pred4[:, 1] = act4_host[1] + grid_y
        pred4[:, 2] = act4_host[2] * anchor_w
        pred4[:, 3] = act4_host[3] * anchor_h

        # ---- host-side target assignment (CPU in the PyTorch module too) ----
        (nGT, nRecall, nRecall75, obj_mask, noobj_mask, _coord_mask,
         tcoord, tconf, tcls) = build_targets_np(
            pred4, np.asarray(target), anchors, nA, nH, nW, nC,
            self.net_width, self.net_height, self.ignore_thresh, self.rescore)

        # ---- Pallas kernel 2: dense objectness BCE over all D cells ----
        conf_dev = out5[:, :, NUM_COORD].reshape(D)
        conf_dev = jnp.pad(conf_dev, (0, pad)).reshape(r_pad, LANE)
        tgt = np.zeros((2, D_pad), np.float32)           # pad region stays 0
        tgt[0, :D] = tconf.reshape(D)
        tgt[1, :D] = (obj_mask + noobj_mask).reshape(D)  # conf_mask in {0,1}
        tgt = tgt.reshape(2, r_pad, LANE)
        conf_part = conf_loss_pallas(conf_dev, jnp.asarray(tgt), tr, tiles_per_core)
        bce_conf = jnp.sum(conf_part)

        # ---- Pallas kernel 3: obj-cell losses on gathered GT cells ----
        obj_flat = (obj_mask.reshape(D) == 1)
        idx = np.nonzero(obj_flat)[0].astype(np.int32)
        n_obj = int(idx.shape[0])
        M = max(LANE, _round_up(max(n_obj, 1), LANE))
        idx_pad = np.zeros(M, np.int32)
        idx_pad[:n_obj] = idx
        valid = np.zeros((1, M), np.float32)
        valid[0, :n_obj] = 1.0

        b_i, a_i, j_i, i_i = np.unravel_index(idx_pad, (nB, nA, nH, nW))
        bj = jnp.asarray(b_i.astype(np.int32))
        aj = jnp.asarray(a_i.astype(np.int32))
        jj = jnp.asarray(j_i.astype(np.int32))
        ij = jnp.asarray(i_i.astype(np.int32))
        # gather raw logits straight from the output (no (22+nC, D) transposes)
        coord_obj = jnp.transpose(out5[bj, aj, :NUM_COORD, jj, ij], (1, 0))   # (22, M)
        cls_obj = jnp.transpose(out5[bj, aj, NUM_LABELS:, jj, ij], (1, 0))    # (nC, M)

        tcoord_obj = tcoord.reshape(NUM_COORD, D)[:, idx_pad]
        tcls_obj = tcls.reshape(D, nC)[idx_pad].T

        obj_part = obj_loss_pallas(coord_obj, cls_obj,
                                   jnp.asarray(tcoord_obj),
                                   jnp.asarray(tcls_obj),
                                   jnp.asarray(valid))

        bce_xy = obj_part[0, 0]
        mse_wh = obj_part[0, 1]
        mse_corner = obj_part[0, 2]
        bce_cls = obj_part[0, 3]

        # ---- final combination on-device (single sync for the caller) ----
        loss_coord = (bce_xy + mse_wh) / nB
        loss_corner = mse_corner / nB
        loss_conf = bce_conf / nB
        loss_cls = bce_cls / nB
        loss_box = loss_coord + 1.0 * loss_corner
        loss = loss_box + loss_conf + 1.0 * loss_cls
        return loss


# --------------------------------------------------------------------------
# main
# --------------------------------------------------------------------------

if __name__ == "__main__":
    nB, nH, nW = 2, 16, 16
    num_classes = 4
    anchors_cfg = [1.5, 2.0, 3.0, 4.0, 5.0, 6.0]   # deterministic "parameters"

    layer = YoloLayerPallas(anchor_mask=[0, 1], num_classes=num_classes,
                            anchors=anchors_cfg, num_anchors=3)
    # normally set by the darknet framework from the net cfg
    layer.net_width = 64
    layer.net_height = 64

    nA = len(layer.anchor_mask)
    C = nA * (NUM_LABELS + num_classes)            # 2 * 27 = 54

    key = jax.random.PRNGKey(0)
    k1, k2, k3 = jax.random.split(key, 3)

    x = 0.5 * jax.random.normal(k1, (nB, C, nH, nW), dtype=jnp.float32)

    # target: (nB, 50 * 23) — up to 50 GT boxes, row = [cls, 20 kpt coords, w, h]
    n_gt = 3
    tvals = jax.random.uniform(k2, (nB, 50, NUM_LABELS),
                               minval=0.1, maxval=0.9, dtype=jnp.float32)
    cls_ids = jax.random.randint(k3, (nB, 50), 0, num_classes).astype(jnp.float32)
    tvals = tvals.at[:, :, 0].set(cls_ids)
    valid = (jnp.arange(50) < n_gt)[None, :, None]
    tvals = jnp.where(valid, tvals, 0.0)           # x==0 terminates the GT loop
    target = tvals.reshape(nB, 50 * NUM_LABELS)

    loss = layer.forward(x, target)
    loss = jax.block_until_ready(loss)
    assert np.isfinite(float(loss)), "loss is not finite"
    print("KERNEL_OK")
</pallas_src>

<mosaic_0001>
module attributes {stable_mosaic.version = 11 : i64} {
  func.func @_act_kernel(%arg0: i32, %arg1: i32, %arg2: memref<4x8x128xf32, #tpu.memory_space<vmem>>, %arg3: memref<4x8x128xf32, #tpu.memory_space<vmem>>) attributes {dimension_semantics = [#tpu.dimension_semantics<parallel>, #tpu.dimension_semantics<parallel>], iteration_bounds = array<i64: 2, 1>, scalar_prefetch = 0 : i64, scratch_operands = 0 : i64, tpu.core_type = #tpu.core_type<tc>, window_params = [{transform_indices = @transform_0, window_bounds = array<i64: 4, 8, 128>}, {transform_indices = @transform_1, window_bounds = array<i64: 4, 8, 128>}]} {
    %c0 = arith.constant 0 : index
    %c0_0 = arith.constant 0 : index
    %c0_1 = arith.constant 0 : index
    %0 = vector.load %arg2[%c0, %c0_0, %c0_1] : memref<4x8x128xf32, #tpu.memory_space<vmem>>, vector<4x8x128xf32>
    %1 = tpu.iota {dimensions = array<i32: 0>} : vector<4x8x128xi32>
    %c2_i32 = arith.constant 2 : i32
    %2 = vector.broadcast %c2_i32 : i32 to vector<4x8x128xi32>
    %3 = arith.cmpi slt, %1, %2 : vector<4x8x128xi32>
    %cst = arith.constant 0.000000e+00 : f32
    %4 = vector.broadcast %cst : f32 to vector<4x8x128xf32>
    %5 = arith.subf %4, %0 : vector<4x8x128xf32>
    %6 = arith.select %3, %5, %0 : vector<4x8x128xi1>, vector<4x8x128xf32>
    %7 = math.exp %6 : vector<4x8x128xf32>
    %cst_2 = arith.constant 1.000000e+00 : f32
    %8 = vector.broadcast %cst_2 : f32 to vector<4x8x128xf32>
    %9 = arith.addf %8, %7 : vector<4x8x128xf32>
    %cst_3 = arith.constant 1.000000e+00 : f32
    %10 = vector.broadcast %cst_3 : f32 to vector<4x8x128xf32>
    %11 = arith.divf %10, %9 : vector<4x8x128xf32>
    %12 = arith.select %3, %11, %7 : vector<4x8x128xi1>, vector<4x8x128xf32>
    %c0_4 = arith.constant 0 : index
    %c0_5 = arith.constant 0 : index
    %c0_6 = arith.constant 0 : index
    %13 = vector.load %arg3[%c0_4, %c0_5, %c0_6] : memref<4x8x128xf32, #tpu.memory_space<vmem>>, vector<4x8x128xf32>
    tpu.vector_store %arg3[%c0_4, %c0_5, %c0_6], %12 {strides = array<i32>} : memref<4x8x128xf32, #tpu.memory_space<vmem>>, vector<4x8x128xf32>,
    return
  }
  func.func @transform_0(%arg0: i32, %arg1: i32) -> (i32, i32, i32) {
    %c1_i32 = arith.constant 1 : i32
    %0 = arith.muli %arg0, %c1_i32 : i32
    %1 = arith.addi %0, %arg1 : i32
    %c0_i32 = arith.constant 0 : i32
    %c0_i32_0 = arith.constant 0 : i32
    %c0_i32_1 = arith.constant 0 : i32
    return %c0_i32, %1, %c0_i32_0 : i32, i32, i32
  }
  func.func @transform_1(%arg0: i32, %arg1: i32) -> (i32, i32, i32) {
    %c1_i32 = arith.constant 1 : i32
    %0 = arith.muli %arg0, %c1_i32 : i32
    %1 = arith.addi %0, %arg1 : i32
    %c0_i32 = arith.constant 0 : i32
    %c0_i32_0 = arith.constant 0 : i32
    %c0_i32_1 = arith.constant 0 : i32
    return %c0_i32, %1, %c0_i32_0 : i32, i32, i32
  }
}

</mosaic_0001>

<llo_original>
// kernel: tpu_custom_call.1
$region0: #{tpu_custom_call.1}
  #allocation0 [shape = 'u32[]', space=smem, size = 0x4, offset = 0x4, fixed_abs, tag = 'smem constant byte address 0x4 - core index']
  #allocation1 [shape = 'u32[72,128]{1,0:T(1,128)}', space=vmem, size = 0x9000, scoped, tag = 'internal scratch']
  %s0 = inlined_call_operand.hbm [shape: f32[4,16,128], index: 0, kind: input, shape index: {}]
  %s1 = inlined_call_operand.hbm [shape: f32[4,16,128], index: 1, kind: output, shape index: {}]
  %s2 = sld [smem:[#allocation0]]
  $region41: #{tpu_custom_call.1} parent=0
    _
  %s4 = ssub.s32 1, %s2
  %s5 = scalar_select 0, %s4, %s2
  $region1: #{tpu_custom_call.1} parent=0
    #allocation2 [shape = 'u8[32768]{0}', space=vmem, size = 0x8000, scoped, tag = 'input window, operand 0']
    #allocation3 [shape = 's32[2]{0}', space=sflag, size = 0x8, scoped, tag = 'scoped memory for tpu_custom_call.1']
    #allocation4 [shape = 's32[2]{0}', space=sflag, size = 0x8, scoped, tag = 'scoped memory for tpu_custom_call.1']
    #allocation5 [shape = 'u8[32768]{0}', space=vmem, size = 0x8000, scoped, tag = 'output window, operand 0']
    %6 = vsyncpa [#allocation3], 0
    %s7 = scalar_lea.sflag [#allocation3], 1
    %8 = vsyncpa %s7, 0
    %9 = vsyncpa [#allocation4], 0
    %s10 = scalar_lea.sflag [#allocation4], 1
    %11 = vsyncpa %s10, 0
    loop: start=0, step=1, limit=4
    $region2: #{tpu_custom_call.1} parent=1 // loop_pre_header
      _
    $region3: #{tpu_custom_call.1} parent=1 // loop_header
      %s13 = sphi 0, %s17
      %p14 = scmp.ge.s32.totalorder %s13, 4
      %s20 = sphi 0, %s32
      %s21 = sphi 0, %s28
      %s22 = sphi 0, %s20
      %s23 = sphi 0, %s21
      %s24 = sphi 0, %s22
      %s25 = sphi 0, %s23
      %s37 = sphi 0, %s39
      %s40 = sphi 0, %s37
      %s41 = sphi 0, %s40
      %s57 = sphi 0, %s41
      %s65 = sphi 0, %s67
      %s68 = sphi 0, %s65
      %s69 = sphi 0, %s68
      %s85 = sphi 0, %s69
    $region4: #{tpu_custom_call.1} parent=1 // loop_header_branch
      %16 = sbr.rel (%p14) target = $region8
    $region5: #{tpu_custom_call.1} parent=1 // loop_body
      %s18 = ssub.s32 %s13, 1
      %s19 = ssub.s32 %s13, 2
      %s26 = sadd.s32 1, %s21
      %p27 = scmp.ge.s32.totalorder %s26, 1
      %s28 = scalar_select %p27, 0, %s26
      %s29 = sadd.s32 1, %s20
      %s30 = scalar_select %p27, %s29, %s20
      %p31 = scmp.ge.s32.totalorder %s30, 2
      %s32 = scalar_select %p31, 0, %s30
      %s33 = sadd.s32 %s20, %s21
      %s34 = sadd.s32 %s32, %s28
      %s35 = ssub.s32 %s33, %s34
      %p36 = scmp.eq.s32.totalorder %s35, 0
      %s38 = sadd.s32 %s37, 1
      %s39 = scalar_select %p36, %s37, %s38
      %p42 = pneg %p36
      %p43 = scmp.eq.s32.totalorder %s13, 1
      %p44 = por %p42, %p43
      %p45 = scmp.ne.s32.totalorder %s37, %s40
      %p46 = scmp.eq.s32.totalorder %s13, 0
      %p47 = por %p45, %p46
      %p48 = scmp.ne.s32.totalorder %s37, %s40
      %p49 = scmp.eq.s32.totalorder %s18, 1
      %p50 = por %p48, %p49
      %p51 = scmp.ne.s32.totalorder %s40, %s41
      %p52 = scmp.eq.s32.totalorder %s18, 0
      %p53 = por %p51, %p52
      %p54 = scmp.ne.s32.totalorder %s40, %s41
      %p55 = scmp.eq.s32.totalorder %s19, 1
      %p56 = por %p54, %p55
      %p58 = scmp.ne.s32.totalorder %s41, %s57
      %p59 = scmp.eq.s32.totalorder %s19, 0
      %p60 = por %p58, %p59
      %s61 = sadd.s32 %s20, %s21
      %s62 = sadd.s32 %s32, %s28
      %s63 = ssub.s32 %s61, %s62
      %p64 = scmp.eq.s32.totalorder %s63, 0
      %s66 = sadd.s32 %s65, 1
      %s67 = scalar_select %p64, %s65, %s66
      %p70 = pneg %p64
      %p71 = scmp.eq.s32.totalorder %s13, 1
      %p72 = por %p70, %p71
      %p73 = scmp.ne.s32.totalorder %s65, %s68
      %p74 = scmp.eq.s32.totalorder %s13, 0
      %p75 = por %p73, %p74
      %p76 = scmp.ne.s32.totalorder %s65, %s68
      %p77 = scmp.eq.s32.totalorder %s18, 1
      %p78 = por %p76, %p77
      %p79 = scmp.ne.s32.totalorder %s68, %s69
      %p80 = scmp.eq.s32.totalorder %s18, 0
      %p81 = por %p79, %p80
      %p82 = scmp.ne.s32.totalorder %s68, %s69
      %p83 = scmp.eq.s32.totalorder %s19, 1
      %p84 = por %p82, %p83
      %p86 = scmp.ne.s32.totalorder %s69, %s85
      %p87 = scmp.eq.s32.totalorder %s19, 0
      %p88 = por %p86, %p87
      %p89 = scmp.le.s32.totalorder 1, %s13
      %p90 = scmp.lt.s32.totalorder %s13, 3
      %p91 = pnand %p89, %p90
      %p92 = pneg %p91
      // Predicated region
      $region9: #{tpu_custom_call.1} parent=5 // pred_check
        _
      $region10: #{tpu_custom_call.1} parent=5 // pred_check_branch
        %94 = sbr.rel (%p91) target = $region12
      $region11: #{tpu_custom_call.1} parent=5 // pred_region
        %s95 = ssub.s32 %s13, 1
      $region12: #{tpu_custom_call.1} parent=5 // pred_fallthru
        _
      %p96 = scmp.lt.s32.totalorder %s13, 2
      // Predicated region
      $region13: #{tpu_custom_call.1} parent=5 // pred_check
        %p97 = pneg %p96
      $region14: #{tpu_custom_call.1} parent=5 // pred_check_branch
        %99 = sbr.rel (%p97) target = $region16
      $region15: #{tpu_custom_call.1} parent=5 // pred_region
        // Predicated region
        $region17: #{tpu_custom_call.1} parent=15 // pred_check
          %p100 = pneg %p47
        $region18: #{tpu_custom_call.1} parent=15 // pred_check_branch
          %102 = sbr.rel (%p100) target = $region20
        $region19: #{tpu_custom_call.1} parent=15 // pred_region
          %s103 = sand.u32 %s37, 1
          %s104 = scalar_lea.sflag [#allocation3], %s103
          %s105 = sand.u32 %s37, 1
          %s106 = smul.addr %s105, 32
          %s107 = scalar_lea.vmem [#allocation2], %s106
          %s108 = sadd.s32 %s20, %s21
          %110 = vsyncadd %s104, 0
          %s111 = smul.addr %s108, 8
          %s112 = scalar_lea.hbm %s0, %s111
          %s113 = sshll.u32 %s112, 4
          %s114 = int_to_ptr.hbm [resolvable:$true] %s113
          %s115 = sshll.u32 %s107, 4
          %s116 = int_to_ptr.vmem [resolvable:$true] %s115
          %121 = dma.hbm_to_vmem [thread:$0]  %s114, 512, %s116, %s104, 256, 128, 8
        $region20: #{tpu_custom_call.1} parent=15 // pred_fallthru
          _
      $region16: #{tpu_custom_call.1} parent=5 // pred_fallthru
        _
      %p122 = scmp.le.s32.totalorder 1, %s13
      %p123 = scmp.lt.s32.totalorder %s13, 3
      %p124 = pnand %p122, %p123
      %p125 = pneg %p124
      // Predicated region
      $region21: #{tpu_custom_call.1} parent=5 // pred_check
        _
      $region22: #{tpu_custom_call.1} parent=5 // pred_check_branch
        %127 = sbr.rel (%p124) target = $region24
      $region23: #{tpu_custom_call.1} parent=5 // pred_region
        %s128 = ssub.s32 %s13, 1
        %s129 = sand.u32 %s40, 1
        %s130 = scalar_lea.sflag [#allocation3], %s129
        %s131 = sand.u32 %s40, 1
        %s132 = smul.addr %s131, 32
        %s133 = scalar_lea.vmem [#allocation2], %s132
        // Predicated region
        $region25: #{tpu_custom_call.1} parent=23 // pred_check
          %p134 = pneg %p53
        $region26: #{tpu_custom_call.1} parent=23 // pred_check_branch
          %136 = sbr.rel (%p134) target = $region28
        $region27: #{tpu_custom_call.1} parent=23 // pred_region
          %138 = dma.done %s130, 512
        $region28: #{tpu_custom_call.1} parent=23 // pred_fallthru
          _
        %s139 = sand.u32 %s40, 1
        %s140 = scalar_lea.sflag [#allocation3], %s139
        %s141 = sand.u32 %s40, 1
        %s142 = smul.addr %s141, 32
        %s143 = scalar_lea.vmem [#allocation2], %s142
        %p144 = pneg %p53
        %p145 = pneg %p50
        %p146 = pneg %p81
        %p147 = pneg %p78
        %s148 = sand.u32 %s68, 1
        %s149 = scalar_lea.sflag [#allocation4], %s148
        %s150 = sand.u32 %s68, 1
        %s151 = smul.addr %s150, 32
        %s152 = scalar_lea.vmem [#allocation5], %s151
        %s153 = sadd.s32 %s22, %s23
        %s154 = sadd.s32 %s22, %s23
        %v155 = vld [vmem:[%s133] sm:$0xff]
        %v156 = vld [vmem:[%s133 + $0x8] sm:$0xff]
        %v157 = vld [vmem:[%s133 + $0x10] sm:$0xff]
        %v158 = vld [vmem:[%s133 + $0x18] sm:$0xff]
        %v159 = vsub.f32 0.0, %v155
        %v160 = vsub.f32 0.0, %v156
        %v161 = vsub.f32 0.0, %v157
        %v162 = vsub.f32 0.0, %v158
        %v163 = vsel 1, %v159, %v155
        %v164 = vsel 1, %v160, %v156
        %v165 = vsel 0, %v161, %v157
        %v166 = vsel 0, %v162, %v158
        %v167 = vmul.f32 %v163, 1.442695
        %v168 = vpow.pop %v167
        %v169 = vmul.f32 %v164, 1.442695
        %v170 = vpow.pop %v169
        %v171 = vmul.f32 %v165, 1.442695
        %v172 = vpow.pop %v171
        %v173 = vmul.f32 %v166, 1.442695
        %v174 = vpow.pop %v173
        %v175 = vadd.f32 %v168, 1.0
        %v176 = vadd.f32 %v170, 1.0
        %v177 = vadd.f32 %v172, 1.0
        %v178 = vadd.f32 %v174, 1.0
        %v179 = vrcp.pop %v175
        %v180 = vmul.f32 %v175, %v179
        %v181 = vsub.f32 1.0, %v180
        %v182 = vmul.f32 %v179, %v181
        %v183 = vadd.f32 %v179, %v182
        %vm184 = vweird.f32 %v175
        %vm185 = vweird.f32 %v179
        %vm186 = vmor %vm184, %vm185
        %v187 = vsel %vm186, %v179, %v183
        %v188 = vand.u32 2147483647, %v175
        %vm189 = vcmp.eq.f32.partialorder %v188, 8.507059e+37
        %v190 = vand.u32 %v175, 2147483648
        %v191 = vor.u32 1.1754944e-38, %v190
        %v192 = vsel %vm189, %v191, %v187
        %v193 = vmul.f32 1.0, %v192
        %v194 = vrcp.pop %v176
        %v195 = vmul.f32 %v176, %v194
        %v196 = vsub.f32 1.0, %v195
        %v197 = vmul.f32 %v194, %v196
        %v198 = vadd.f32 %v194, %v197
        %vm199 = vweird.f32 %v176
        %vm200 = vweird.f32 %v194
        %vm201 = vmor %vm199, %vm200
        %v202 = vsel %vm201, %v194, %v198
        %v203 = vand.u32 2147483647, %v176
        %vm204 = vcmp.eq.f32.partialorder %v203, 8.507059e+37
        %v205 = vand.u32 %v176, 2147483648
        %v206 = vor.u32 1.1754944e-38, %v205
        %v207 = vsel %vm204, %v206, %v202
        %v208 = vmul.f32 1.0, %v207
        %v209 = vrcp.pop %v177
        %v210 = vmul.f32 %v177, %v209
        %v211 = vsub.f32 1.0, %v210
        %v212 = vmul.f32 %v209, %v211
        %v213 = vadd.f32 %v209, %v212
        %vm214 = vweird.f32 %v177
        %vm215 = vweird.f32 %v209
        %vm216 = vmor %vm214, %vm215
        %v217 = vsel %vm216, %v209, %v213
        %v218 = vand.u32 2147483647, %v177
        %vm219 = vcmp.eq.f32.partialorder %v218, 8.507059e+37
        %v220 = vand.u32 %v177, 2147483648
        %v221 = vor.u32 1.1754944e-38, %v220
        %v222 = vsel %vm219, %v221, %v217
        %v223 = vmul.f32 1.0, %v222
        %v224 = vrcp.pop %v178
        %v225 = vmul.f32 %v178, %v224
        %v226 = vsub.f32 1.0, %v225
        %v227 = vmul.f32 %v224, %v226
        %v228 = vadd.f32 %v224, %v227
        %vm229 = vweird.f32 %v178
        %vm230 = vweird.f32 %v224
        %vm231 = vmor %vm229, %vm230
        %v232 = vsel %vm231, %v224, %v228
        %v233 = vand.u32 2147483647, %v178
        %vm234 = vcmp.eq.f32.partialorder %v233, 8.507059e+37
        %v235 = vand.u32 %v178, 2147483648
        %v236 = vor.u32 1.1754944e-38, %v235
        %v237 = vsel %vm234, %v236, %v232
        %v238 = vmul.f32 1.0, %v237
        %v239 = vsel 1, %v193, %v168
        %v240 = vsel 1, %v208, %v170
        %v241 = vsel 0, %v223, %v172
        %v242 = vsel 0, %v238, %v174
        %243 = vst [vmem:[%s152] sm:$0xff] %v239
        %244 = vst [vmem:[%s152 + $0x8] sm:$0xff] %v240
        %245 = vst [vmem:[%s152 + $0x10] sm:$0xff] %v241
        %246 = vst [vmem:[%s152 + $0x18] sm:$0xff] %v242
        %s247 = sand.u32 %s68, 1
        %s248 = scalar_lea.sflag [#allocation4], %s247
        %s249 = sand.u32 %s68, 1
        %s250 = smul.addr %s249, 32
        %s251 = scalar_lea.vmem [#allocation5], %s250
        // Predicated region
        $region29: #{tpu_custom_call.1} parent=23 // pred_check
          %p252 = pneg %p78
        $region30: #{tpu_custom_call.1} parent=23 // pred_check_branch
          %254 = sbr.rel (%p252) target = $region32
        $region31: #{tpu_custom_call.1} parent=23 // pred_region
          %s255 = sadd.s32 %s22, %s23
          %257 = vsyncadd %s248, 0
          %s258 = smul.addr %s255, 8
          %s259 = scalar_lea.hbm %s1, %s258
          %s260 = sshll.u32 %s251, 4
          %s261 = int_to_ptr.vmem [resolvable:$true] %s260
          %s262 = sshll.u32 %s259, 4
          %s263 = int_to_ptr.hbm [resolvable:$true] %s262
          %268 = dma.vmem_to_hbm [thread:$0]  %s261, 512, %s263, %s248, 128, 256, 8
        $region32: #{tpu_custom_call.1} parent=23 // pred_fallthru
          _
      $region24: #{tpu_custom_call.1} parent=5 // pred_fallthru
        _
      %p269 = scmp.le.s32.totalorder 2, %s13
      // Predicated region
      $region33: #{tpu_custom_call.1} parent=5 // pred_check
        %p270 = pneg %p269
      $region34: #{tpu_custom_call.1} parent=5 // pred_check_branch
        %272 = sbr.rel (%p270) target = $region36
      $region35: #{tpu_custom_call.1} parent=5 // pred_region
        %s273 = ssub.s32 %s13, 2
        // Predicated region
        $region37: #{tpu_custom_call.1} parent=35 // pred_check
          %p274 = pneg %p84
        $region38: #{tpu_custom_call.1} parent=35 // pred_check_branch
          %276 = sbr.rel (%p274) target = $region40
        $region39: #{tpu_custom_call.1} parent=35 // pred_region
          %s277 = sand.u32 %s69, 1
          %s278 = scalar_lea.sflag [#allocation4], %s277
          %s279 = sand.u32 %s69, 1
          %s280 = smul.addr %s279, 32
          %s281 = scalar_lea.vmem [#allocation5], %s280
          %283 = dma.done %s278, 512
        $region40: #{tpu_custom_call.1} parent=35 // pred_fallthru
          _
      $region36: #{tpu_custom_call.1} parent=5 // pred_fallthru
        _
    $region6: #{tpu_custom_call.1} parent=1 // loop_footer
      %s17 = sadd.s32 1, %s13
    $region7: #{tpu_custom_call.1} parent=1 // loop_footer_branch
      %12 = sbr.rel target = $region3
    $region8: #{tpu_custom_call.1} parent=1 // loop_exit
      _
    %284 = vsyncpa [#allocation3], 1
    %s285 = scalar_lea.sflag [#allocation3], 1
    %286 = vsyncpa %s285, 1
    %287 = vsyncpa [#allocation4], 1
    %s288 = scalar_lea.sflag [#allocation4], 1
    %289 = vsyncpa %s288, 1

</llo_original>
